<compile_context>
chip_gen: v5e
topology: v5e:2x2
jax: 0.10.0
libtpu: 0.0.40
codegen_flags: <defaults>
</compile_context>

<pallas_src>
import jax
import jax.numpy as jnp
from jax.experimental import pallas as pl
from jax.experimental.pallas import tpu as pltpu

D_IN, D_H, D_OUT = 10, 5, 2
LANE = 128
_SMALL_BATCH_FASTPATH = 4096  # below this, plain fused XLA beats the kernel


def tail_mlp_kernel(x_ref, w1_ref, b1_ref, w2_ref, b2_ref, o_ref):
    # x_ref: (10, TB)  features x batch-tile (batch on lanes)
    # w1_ref: (5, 10), b1_ref: (5, 1), w2_ref: (2, 5), b2_ref: (2, 1)
    h = jnp.dot(w1_ref[...], x_ref[...], preferred_element_type=jnp.float32)
    h = jnp.maximum(h + b1_ref[...], 0.0)            # bias broadcasts over lanes
    y = jnp.dot(w2_ref[...], h, preferred_element_type=jnp.float32)
    o_ref[...] = (y + b2_ref[...]).astype(o_ref.dtype)


def _round_up(n, m):
    return ((n + m - 1) // m) * m


def _batch_tile_cap_for_device():
    # Per-generation cap (review): v5e's default scoped VMEM is 16 MiB so stay
    # around 32K lanes (~6.3 MiB double-buffered); v6e/v7x take 64K (~12.6 MiB)
    # to amortize step overhead against 1.4-3.2 TB/s HBM.
    try:
        kind = jax.devices()[0].device_kind.lower()
    except Exception:
        kind = ""
    if "v5" in kind:
        return 32768
    return 65536


def _pick_batch_tile(B):
    cap = _batch_tile_cap_for_device()
    # Aim for >=2 grid steps when the batch is big enough: lets the "parallel"
    # axis shard across the two TensorCores on v7x; negligible cost elsewhere.
    half = _round_up(max(-(-B // 2), 1), LANE)
    return max(LANE, min(half, cap))


def _dense_ref(x, w1, b1, w2, b2):
    # PyTorch semantics: y = relu(x @ W1^T + b1) @ W2^T + b2
    return jnp.maximum(x @ w1.T + b1[None, :], 0.0) @ w2.T + b2[None, :]


def tail_model_forward_feature_major(xT, w1, b1, w2, b2, *, batch_tile=None):
    """Core Pallas path.  xT: (10, B) feature-major activations (batch on lanes).

    Returns (2, B) feature-major output.  Upstream producers that can emit
    feature-major activations should call this directly (review option (a)):
    it has no wrapper-side transpose/pad at all.
    """
    assert xT.shape[0] == D_IN
    B = xT.shape[1]
    TB = batch_tile if batch_tile is not None else _pick_batch_tile(B)
    grid = (pl.cdiv(B, TB),)  # ragged last block handled by Pallas masking

    b1c = b1.reshape(D_H, 1)
    b2c = b2.reshape(D_OUT, 1)

    # Double-buffered VMEM footprint: x tile (10 -> 16 padded sublanes) plus the
    # output tile ~= 192*TB bytes.  Give headroom, stay under v7x's 64 MiB.
    vmem_limit = int(min(48 << 20, max(32 << 20, 2 * 192 * TB)))

    cost = pl.CostEstimate(
        flops=2 * B * (D_IN * D_H + D_H * D_OUT),
        transcendentals=0,
        bytes_accessed=4 * (B * D_IN + B * D_OUT
                            + D_IN * D_H + D_H + D_H * D_OUT + D_OUT),
    )

    return pl.pallas_call(
        tail_mlp_kernel,
        out_shape=jax.ShapeDtypeStruct((D_OUT, B), jnp.float32),
        grid=grid,
        in_specs=[
            pl.BlockSpec((D_IN, TB), lambda i: (0, i)),     # x tile, streamed
            pl.BlockSpec((D_H, D_IN), lambda i: (0, 0)),    # w1, VMEM-resident
            pl.BlockSpec((D_H, 1), lambda i: (0, 0)),       # b1
            pl.BlockSpec((D_OUT, D_H), lambda i: (0, 0)),   # w2
            pl.BlockSpec((D_OUT, 1), lambda i: (0, 0)),     # b2
        ],
        out_specs=pl.BlockSpec((D_OUT, TB), lambda i: (0, i)),
        compiler_params=pltpu.CompilerParams(
            dimension_semantics=("parallel",),
            vmem_limit_bytes=vmem_limit,
        ),
        cost_estimate=cost,
    )(xT, w1, b1c, w2, b2c)


def tail_model_forward(x, w1, b1, w2, b2, *, force_pallas=False, batch_tile=None):
    """PyTorch-layout entry point.  x: (B, 10) f32; returns (B, 2).

    w1: (5, 10), b1: (5,), w2: (2, 5), b2: (2,) — exactly nn.Linear layout.
    """
    B = x.shape[0]
    # Small-batch fast path: launch cost + layout plumbing would dominate; XLA
    # fuses this 120-flop-per-row MLP into one pass.
    if not force_pallas and B <= _SMALL_BATCH_FASTPATH:
        return _dense_ref(x, w1, b1, w2, b2)
    # Batch-major input is mandated by the module spec, so one transpose to
    # feature-major happens here; callers that already hold (10, B) activations
    # should use tail_model_forward_feature_major() and avoid it.
    outT = tail_model_forward_feature_major(x.T, w1, b1, w2, b2,
                                            batch_tile=batch_tile)
    return outT.T


def init_params(key):
    # PyTorch nn.Linear default init: U(-1/sqrt(fan_in), 1/sqrt(fan_in)),
    # weights stored (out_features, in_features) exactly like PyTorch.
    k1, k2, k3, k4 = jax.random.split(key, 4)
    bound1 = 1.0 / jnp.sqrt(10.0)
    bound2 = 1.0 / jnp.sqrt(5.0)
    w1 = jax.random.uniform(k1, (D_H, D_IN), jnp.float32, -bound1, bound1)
    b1 = jax.random.uniform(k2, (D_H,), jnp.float32, -bound1, bound1)
    w2 = jax.random.uniform(k3, (D_OUT, D_H), jnp.float32, -bound2, bound2)
    b2 = jax.random.uniform(k4, (D_OUT,), jnp.float32, -bound2, bound2)
    return w1, b1, w2, b2


if __name__ == "__main__":
    key = jax.random.PRNGKey(0)
    k_x, k_x2, k_p = jax.random.split(key, 3)
    w1, b1, w2, b2 = init_params(k_p)

    # 1) Tiny batch, forced through the Pallas kernel (single ragged block).
    B = 8
    x = jax.random.normal(k_x, (B, 10), jnp.float32)
    out = jax.block_until_ready(
        tail_model_forward(x, w1, b1, w2, b2, force_pallas=True))
    ref = _dense_ref(x, w1, b1, w2, b2)
    assert out.shape == (B, 2)
    assert jnp.allclose(out, ref, atol=1e-5, rtol=1e-5)

    # 2) Multi-step grid with a ragged last block (300 rows, 128-lane tiles).
    B2 = 300
    x2 = jax.random.normal(k_x2, (B2, 10), jnp.float32)
    out2 = jax.block_until_ready(
        tail_model_forward(x2, w1, b1, w2, b2, force_pallas=True, batch_tile=128))
    ref2 = _dense_ref(x2, w1, b1, w2, b2)
    assert out2.shape == (B2, 2)
    assert jnp.allclose(out2, ref2, atol=1e-5, rtol=1e-5)

    # 3) Default small-batch fast path (plain fused XLA) also matches.
    out3 = jax.block_until_ready(tail_model_forward(x, w1, b1, w2, b2))
    assert jnp.allclose(out3, ref, atol=1e-5, rtol=1e-5)

    print("KERNEL_OK")
</pallas_src>

<mosaic_0001>
module attributes {stable_mosaic.version = 11 : i64} {
  func.func @tail_mlp_kernel(%arg0: i32, %arg1: memref<10x128xf32, #tpu.memory_space<vmem>>, %arg2: memref<5x10xf32, #tpu.memory_space<vmem>>, %arg3: memref<5x1xf32, #tpu.memory_space<vmem>>, %arg4: memref<2x5xf32, #tpu.memory_space<vmem>>, %arg5: memref<2x1xf32, #tpu.memory_space<vmem>>, %arg6: memref<2x128xf32, #tpu.memory_space<vmem>>) attributes {dimension_semantics = [#tpu.dimension_semantics<parallel>], iteration_bounds = array<i64: 1>, scalar_prefetch = 0 : i64, scratch_operands = 0 : i64, tpu.core_type = #tpu.core_type<tc>, window_params = [{transform_indices = @transform_0, window_bounds = array<i64: 10, 128>}, {pipeline_mode = #tpu.pipeline_mode<synchronous>, transform_indices = @transform_1, window_bounds = array<i64: 5, 10>}, {pipeline_mode = #tpu.pipeline_mode<synchronous>, transform_indices = @transform_2, window_bounds = array<i64: 5, 1>}, {pipeline_mode = #tpu.pipeline_mode<synchronous>, transform_indices = @transform_3, window_bounds = array<i64: 2, 5>}, {pipeline_mode = #tpu.pipeline_mode<synchronous>, transform_indices = @transform_4, window_bounds = array<i64: 2, 1>}, {transform_indices = @transform_5, window_bounds = array<i64: 2, 128>}]} {
    %c0 = arith.constant 0 : index
    %c0_0 = arith.constant 0 : index
    %0 = vector.load %arg2[%c0, %c0_0] : memref<5x10xf32, #tpu.memory_space<vmem>>, vector<5x10xf32>
    %c0_1 = arith.constant 0 : index
    %c0_2 = arith.constant 0 : index
    %1 = vector.load %arg1[%c0_1, %c0_2] : memref<10x128xf32, #tpu.memory_space<vmem>>, vector<10x128xf32>
    %cst = arith.constant dense<0.000000e+00> : vector<5x128xf32>
    %2 = tpu.matmul %0, %1, %cst {dimension_numbers = #tpu.dot_dimension_numbers<[1], [0], [0], [1], [0, 0, 1, 1], [], []>} : vector<5x10xf32>, vector<10x128xf32>, vector<5x128xf32> -> vector<5x128xf32>
    %c0_3 = arith.constant 0 : index
    %c0_4 = arith.constant 0 : index
    %3 = vector.load %arg3[%c0_3, %c0_4] : memref<5x1xf32, #tpu.memory_space<vmem>>, vector<5x1xf32>
    %4 = vector.broadcast %3 : vector<5x1xf32> to vector<5x128xf32>
    %5 = arith.addf %2, %4 : vector<5x128xf32>
    %cst_5 = arith.constant 0.000000e+00 : f32
    %6 = vector.broadcast %cst_5 : f32 to vector<5x128xf32>
    %7 = arith.maximumf %5, %6 : vector<5x128xf32>
    %c0_6 = arith.constant 0 : index
    %c0_7 = arith.constant 0 : index
    %8 = vector.load %arg4[%c0_6, %c0_7] : memref<2x5xf32, #tpu.memory_space<vmem>>, vector<2x5xf32>
    %cst_8 = arith.constant dense<0.000000e+00> : vector<2x128xf32>
    %9 = tpu.matmul %8, %7, %cst_8 {dimension_numbers = #tpu.dot_dimension_numbers<[1], [0], [0], [1], [0, 0, 1, 1], [], []>} : vector<2x5xf32>, vector<5x128xf32>, vector<2x128xf32> -> vector<2x128xf32>
    %c0_9 = arith.constant 0 : index
    %c0_10 = arith.constant 0 : index
    %10 = vector.load %arg5[%c0_9, %c0_10] : memref<2x1xf32, #tpu.memory_space<vmem>>, vector<2x1xf32>
    %11 = vector.broadcast %10 : vector<2x1xf32> to vector<2x128xf32>
    %12 = arith.addf %9, %11 : vector<2x128xf32>
    %c0_11 = arith.constant 0 : index
    %c0_12 = arith.constant 0 : index
    %13 = vector.load %arg6[%c0_11, %c0_12] : memref<2x128xf32, #tpu.memory_space<vmem>>, vector<2x128xf32>
    tpu.vector_store %arg6[%c0_11, %c0_12], %12 {strides = array<i32>} : memref<2x128xf32, #tpu.memory_space<vmem>>, vector<2x128xf32>,
    return
  }
  func.func @transform_0(%arg0: i32) -> (i32, i32) {
    %c0_i32 = arith.constant 0 : i32
    %c0_i32_0 = arith.constant 0 : i32
    return %c0_i32, %arg0 : i32, i32
  }
  func.func @transform_1(%arg0: i32) -> (i32, i32) {
    %c0_i32 = arith.constant 0 : i32
    %c0_i32_0 = arith.constant 0 : i32
    %c0_i32_1 = arith.constant 0 : i32
    return %c0_i32, %c0_i32_0 : i32, i32
  }
  func.func @transform_2(%arg0: i32) -> (i32, i32) {
    %c0_i32 = arith.constant 0 : i32
    %c0_i32_0 = arith.constant 0 : i32
    %c0_i32_1 = arith.constant 0 : i32
    return %c0_i32, %c0_i32_0 : i32, i32
  }
  func.func @transform_3(%arg0: i32) -> (i32, i32) {
    %c0_i32 = arith.constant 0 : i32
    %c0_i32_0 = arith.constant 0 : i32
    %c0_i32_1 = arith.constant 0 : i32
    return %c0_i32, %c0_i32_0 : i32, i32
  }
  func.func @transform_4(%arg0: i32) -> (i32, i32) {
    %c0_i32 = arith.constant 0 : i32
    %c0_i32_0 = arith.constant 0 : i32
    %c0_i32_1 = arith.constant 0 : i32
    return %c0_i32, %c0_i32_0 : i32, i32
  }
  func.func @transform_5(%arg0: i32) -> (i32, i32) {
    %c0_i32 = arith.constant 0 : i32
    %c0_i32_0 = arith.constant 0 : i32
    return %c0_i32, %arg0 : i32, i32
  }
}

</mosaic_0001>

<llo_original>
// kernel: tpu_custom_call.1
$region0: #{tpu_custom_call.1}
  #allocation0 [shape = 'u32[]', space=smem, size = 0x4, offset = 0x4, fixed_abs, tag = 'smem constant byte address 0x4 - core index']
  #allocation1 [shape = 'u32[72,128]{1,0:T(1,128)}', space=vmem, size = 0x9000, scoped, tag = 'internal scratch']
  %s0 = inlined_call_operand.vmem [shape: f32[10,8], index: 0, kind: input, shape index: {}]
  %s1 = inlined_call_operand.vmem [shape: f32[5,10], index: 1, kind: input, shape index: {}]
  %s2 = inlined_call_operand.vmem [shape: f32[5,1], index: 2, kind: input, shape index: {}]
  %s3 = inlined_call_operand.vmem [shape: f32[2,5], index: 3, kind: input, shape index: {}]
  %s4 = inlined_call_operand.vmem [shape: f32[2,1], index: 4, kind: input, shape index: {}]
  %s5 = inlined_call_operand.hbm [shape: f32[2,8], index: 5, kind: output, shape index: {}]
  %s6 = sld [smem:[#allocation0]]
  $region30: #{tpu_custom_call.1} parent=0
    _
  %s8 = ssub.s32 1, %s6
  %s9 = scalar_select 0, %s8, %s6
  $region1: #{tpu_custom_call.1} parent=0
    #allocation2 [shape = 'u8[1024]{0}', space=vmem, size = 0x400, scoped, tag = 'output window, operand 0, single buffered']
    #allocation3 [shape = 's32[1]{0}', space=sflag, size = 0x4, scoped, tag = 'scoped memory for tpu_custom_call.1']
    %10 = vsyncpa [#allocation3], 0
    // Predicated region
    $region2: #{tpu_custom_call.1} parent=1 // pred_check
      _
    $region3: #{tpu_custom_call.1} parent=1 // pred_check_branch
      %12 = sbr.rel (0) target = $region5
    $region4: #{tpu_custom_call.1} parent=1 // pred_region
      _
    $region5: #{tpu_custom_call.1} parent=1 // pred_fallthru
      _
    // Predicated region
    $region6: #{tpu_custom_call.1} parent=1 // pred_check
      _
    $region7: #{tpu_custom_call.1} parent=1 // pred_check_branch
      %14 = sbr.rel (0) target = $region9
    $region8: #{tpu_custom_call.1} parent=1 // pred_region
      _
    $region9: #{tpu_custom_call.1} parent=1 // pred_fallthru
      _
    // Predicated region
    $region10: #{tpu_custom_call.1} parent=1 // pred_check
      _
    $region11: #{tpu_custom_call.1} parent=1 // pred_check_branch
      %16 = sbr.rel (0) target = $region13
    $region12: #{tpu_custom_call.1} parent=1 // pred_region
      _
    $region13: #{tpu_custom_call.1} parent=1 // pred_fallthru
      _
    // Predicated region
    $region14: #{tpu_custom_call.1} parent=1 // pred_check
      _
    $region15: #{tpu_custom_call.1} parent=1 // pred_check_branch
      %18 = sbr.rel (0) target = $region17
    $region16: #{tpu_custom_call.1} parent=1 // pred_region
      _
    $region17: #{tpu_custom_call.1} parent=1 // pred_fallthru
      _
    // Predicated region
    $region18: #{tpu_custom_call.1} parent=1 // pred_check
      _
    $region19: #{tpu_custom_call.1} parent=1 // pred_check_branch
      %20 = sbr.rel (0) target = $region21
    $region20: #{tpu_custom_call.1} parent=1 // pred_region
      _
    $region21: #{tpu_custom_call.1} parent=1 // pred_fallthru
      _
    %v21 = vld [vmem:[%s1] sm:$0x1f]
    %v22 = vld [vmem:[%s0] sm:$0xff]
    %v23 = vld [vmem:[%s0 + $0x8] sm:$0x3]
    %v24 = vld [vmem:[%s2] sm:$0x1f]
    %26 = vset.pattern.permute.xlu0 0
    %27 = vperm.xlu0 %26, %v24
    %v28 = vpop.permute.xlu0 %27
    %vm30 = vcmask 80896
    %v32 = vsel %vm30, %v21, 0
    %vm34 = vcmask 1041408
    %v36 = vsel %vm34, %v23, 0
    %38 = vmatpush.msra.mxu0 0.0
    %39 = vmatpush.msra.mxu0 0.0
    %40 = vmatpush.msra.mxu0 0.0
    %41 = vmatpush.msra.mxu0 0.0
    %42 = vmatpush.msra.mxu0 0.0
    %43 = vmatpush.msra.mxu0 0.0
    %44 = vmatpush.msra.mxu0 0.0
    %45 = vmatpush.msra.mxu0 0.0
    %46 = vmatpush.msra.mxu0 0.0
    %47 = vmatpush.msra.mxu0 0.0
    %48 = vmatpush.msra.mxu0 0.0
    %49 = vmatpush.msra.mxu0 0.0
    %50 = vmatpush.msra.mxu0 0.0
    %51 = vmatpush.msra.mxu0 0.0
    %52 = vmatpush.msra.mxu0 %v36
    %53 = vmatpush.msra.mxu0 %v22
    %54 = vmatmul.f32.gmra.mxu0 %v32
    %v55 = vpop.f32.mrf.mxu0
    %v56 = vadd.f32 %v28, %v55
    %57 = vdwg.mxu0
    %v58 = vmax.f32 %v56, 0.0
    %v59 = vld [vmem:[%s3] sm:$0x3]
    %v60 = vld [vmem:[%s4] sm:$0x3]
    %62 = vset.pattern.permute.xlu0 0
    %63 = vperm.xlu0 %62, %v60
    %v64 = vpop.permute.xlu0 %63
    %vm66 = vcmask 39936
    %v68 = vsel %vm66, %v59, 0
    %vm70 = vcmask 1044480
    %v72 = vsel %vm70, %v58, 0
    %74 = vmatpush.msra.mxu0 0.0
    %75 = vmatpush.msra.mxu0 0.0
    %76 = vmatpush.msra.mxu0 0.0
    %77 = vmatpush.msra.mxu0 0.0
    %78 = vmatpush.msra.mxu0 0.0
    %79 = vmatpush.msra.mxu0 0.0
    %80 = vmatpush.msra.mxu0 0.0
    %81 = vmatpush.msra.mxu0 0.0
    %82 = vmatpush.msra.mxu0 0.0
    %83 = vmatpush.msra.mxu0 0.0
    %84 = vmatpush.msra.mxu0 0.0
    %85 = vmatpush.msra.mxu0 0.0
    %86 = vmatpush.msra.mxu0 0.0
    %87 = vmatpush.msra.mxu0 0.0
    %88 = vmatpush.msra.mxu0 0.0
    %89 = vmatpush.msra.mxu0 %v72
    %90 = vmatmul.f32.gmra.mxu0 %v68
    %v91 = vpop.f32.mrf.mxu0
    %v92 = vadd.f32 %v64, %v91
    %93 = vdwg.mxu0
    %94 = vst [vmem:[#allocation2] sm:$0x3] %v92
    // Predicated region
    $region22: #{tpu_custom_call.1} parent=1 // pred_check
      _
    $region23: #{tpu_custom_call.1} parent=1 // pred_check_branch
      %96 = sbr.rel (0) target = $region25
    $region24: #{tpu_custom_call.1} parent=1 // pred_region
      %98 = vsyncadd [#allocation3], 0
      %s100 = sshll.u32 [#allocation2], 4
      %s101 = int_to_ptr.vmem [resolvable:$true] %s100
      %s102 = sshll.u32 %s5, 4
      %s103 = int_to_ptr.hbm [resolvable:$true] %s102
      %105 = dma.vmem_to_hbm [thread:$0]  %s101, 32, %s103, [#allocation3]
    $region25: #{tpu_custom_call.1} parent=1 // pred_fallthru
      _
    // Predicated region
    $region26: #{tpu_custom_call.1} parent=1 // pred_check
      _
    $region27: #{tpu_custom_call.1} parent=1 // pred_check_branch
      %107 = sbr.rel (0) target = $region29
    $region28: #{tpu_custom_call.1} parent=1 // pred_region
      %109 = dma.done [#allocation3], 32
    $region29: #{tpu_custom_call.1} parent=1 // pred_fallthru
      _
    %110 = vsyncpa [#allocation3], 1

</llo_original>
